<compile_context>
chip_gen: v7x
topology: tpu7x:2x2x1
jax: 0.10.0
libtpu: 0.0.40
codegen_flags: <defaults>
</compile_context>

<pallas_src>
import functools

import jax
import jax.numpy as jnp
from jax.experimental import pallas as pl
from jax.experimental.pallas import tpu as pltpu


def _fold_bn(gamma, beta, mean, var, eps=1e-5):
    scale = gamma / jnp.sqrt(var + eps)
    bias = beta - mean * scale
    return scale, bias


def _conv3x3_bn_relu(x2d, w2d_ref, scale_ref, bias_ref, H, W,
                     left_edge, right_edge):
    """Fused 3x3 conv (SAME, stride 1) + folded BN + ReLU on a flat (C, H*W) tile."""
    C, HW = x2d.shape
    PAD = W + 1  # enough zero columns so all H-out-of-bounds taps read zeros

    zeros = jnp.zeros((C, PAD), jnp.float32)
    xf = jnp.concatenate([zeros, x2d, zeros], axis=1)      # (C, HW + 2*(W+1))

    # im2col: 9 statically shifted views, K order = (kh, kw, c) to match weights.
    taps = []
    for kh in range(3):
        for kw in range(3):
            dh, dw = kh - 1, kw - 1
            start = PAD + dh * W + dw                      # static lane offset
            tap = xf[:, start:start + HW]                  # (C, HW)
            if dw == -1:                                   # left-column wrap -> 0
                tap = jnp.where(left_edge, 0.0, tap)
            elif dw == 1:                                  # right-column wrap -> 0
                tap = jnp.where(right_edge, 0.0, tap)
            taps.append(tap)
    patches = jnp.concatenate(taps, axis=0)                # (9*C, HW)

    # Single MXU contraction: (Cout, 9*C) x (9*C, HW) -> (Cout, HW), f32 acc.
    acc = jnp.dot(w2d_ref[...], patches, preferred_element_type=jnp.float32)

    y = acc * scale_ref[...] + bias_ref[...]               # per-channel BN affine
    return jnp.maximum(y, 0.0)                             # ReLU


def jet_dwn_kernel(x_ref, w1_ref, s1_ref, b1_ref, w2_ref, s2_ref, b2_ref,
                   o_ref, *, H, W, NB):
    # x_ref: (NB, Cin, H*W)  w*_ref: (Cout, 9*Cin / 9*Cout)  s/b: (Cout, 1)
    # o_ref: (NB, Cout, H*W)
    HW = H * W
    col = jax.lax.broadcasted_iota(jnp.int32, (1, HW), 1)
    j = col % W
    left_edge = j == 0                                     # shared by both stages
    right_edge = j == (W - 1)                              # and all sub-batch images

    for nb in range(NB):                                   # static unrolled sub-batch loop
        x2d = x_ref[nb].astype(jnp.float32)                # (Cin, HW)
        y1 = _conv3x3_bn_relu(x2d, w1_ref, s1_ref, b1_ref, H, W,
                              left_edge, right_edge)       # stays in VMEM
        y2 = _conv3x3_bn_relu(y1, w2_ref, s2_ref, b2_ref, H, W,
                              left_edge, right_edge)
        o_ref[nb] = y2.astype(o_ref.dtype)                 # lane-dense store


def prepare_params(params, eps=1e-5):
    """One-time param prep (outside forward): fold BN, re-layout conv weights
    from OIHW to the (Cout, 9*Cin) matmul layout used in the kernel."""
    def w_mat(w_oihw):
        o, i, kh, kw = w_oihw.shape
        return jnp.transpose(w_oihw, (0, 2, 3, 1)).reshape(o, kh * kw * i)

    s1, b1 = _fold_bn(params["g1"], params["b1"], params["m1"], params["v1"], eps)
    s2, b2 = _fold_bn(params["g2"], params["b2"], params["m2"], params["v2"], eps)
    cout = params["w1"].shape[0]
    return {
        "w1": w_mat(params["w1"]).astype(jnp.float32),
        "w2": w_mat(params["w2"]).astype(jnp.float32),
        "s1": s1.reshape(cout, 1).astype(jnp.float32),
        "b1": b1.reshape(cout, 1).astype(jnp.float32),
        "s2": s2.reshape(cout, 1).astype(jnp.float32),
        "b2": b2.reshape(cout, 1).astype(jnp.float32),
    }


def _pick_sub_batch(N, Cin, Cout, HW, vmem_budget_bytes=8 << 20):
    """Largest sub-batch block (divisor of N, <= 8) whose double-buffered
    activations fit comfortably in VMEM."""
    per_img = (Cin + Cout) * HW * 4 * 2                    # in + out, double-buffered, f32
    for cand in range(min(N, 8), 0, -1):
        if N % cand == 0 and cand * per_img <= vmem_budget_bytes:
            return cand
    return 1


@functools.partial(jax.jit, static_argnames=())
def jet_dwn_forward(x_nchw, prep):
    """Equivalent of Jet_Dwn.forward (eval-mode BN). NCHW in / NCHW out."""
    N, Cin, H, W = x_nchw.shape
    Cout = prep["w1"].shape[0]
    HW = H * W
    NB = _pick_sub_batch(N, Cin, Cout, HW)

    x_flat = x_nchw.reshape(N, Cin, HW)                    # free reshape (no transpose)

    out_flat = pl.pallas_call(
        functools.partial(jet_dwn_kernel, H=H, W=W, NB=NB),
        out_shape=jax.ShapeDtypeStruct((N, Cout, HW), x_nchw.dtype),
        grid=(N // NB,),
        in_specs=[
            pl.BlockSpec((NB, Cin, HW), lambda n: (n, 0, 0)),
            pl.BlockSpec((Cout, 9 * Cin), lambda n: (0, 0)),
            pl.BlockSpec((Cout, 1), lambda n: (0, 0)),
            pl.BlockSpec((Cout, 1), lambda n: (0, 0)),
            pl.BlockSpec((Cout, 9 * Cout), lambda n: (0, 0)),
            pl.BlockSpec((Cout, 1), lambda n: (0, 0)),
            pl.BlockSpec((Cout, 1), lambda n: (0, 0)),
        ],
        out_specs=pl.BlockSpec((NB, Cout, HW), lambda n: (n, 0, 0)),
        compiler_params=pltpu.CompilerParams(dimension_semantics=("parallel",)),
    )(x_flat, prep["w1"], prep["s1"], prep["b1"],
      prep["w2"], prep["s2"], prep["b2"])

    return out_flat.reshape(N, Cout, H, W)


def ref_forward(x_nchw, params):
    """Pure-JAX reference (lax conv) with identical eval-mode BN semantics."""
    def stage(x, w_oihw, g, b, m, v):
        y = jax.lax.conv_general_dilated(
            x, w_oihw, window_strides=(1, 1), padding="SAME",
            dimension_numbers=("NCHW", "OIHW", "NCHW"))
        s, bias = _fold_bn(g, b, m, v)
        y = y * s[None, :, None, None] + bias[None, :, None, None]
        return jnp.maximum(y, 0.0)

    x = stage(x_nchw, params["w1"], params["g1"], params["b1"],
              params["m1"], params["v1"])
    x = stage(x, params["w2"], params["g2"], params["b2"],
              params["m2"], params["v2"])
    return x


def init_params(key, inn, out):
    ks = jax.random.split(key, 8)
    return {
        # conv weights in PyTorch OIHW layout
        "w1": 0.1 * jax.random.normal(ks[0], (out, inn, 3, 3), jnp.float32),
        "w2": 0.1 * jax.random.normal(ks[1], (out, out, 3, 3), jnp.float32),
        # BN1
        "g1": 1.0 + 0.1 * jax.random.normal(ks[2], (out,), jnp.float32),
        "b1": 0.1 * jax.random.normal(ks[3], (out,), jnp.float32),
        "m1": 0.05 * jax.random.normal(ks[4], (out,), jnp.float32),
        "v1": 0.5 + jnp.abs(0.2 * jax.random.normal(ks[5], (out,), jnp.float32)),
        # BN2
        "g2": 1.0 + 0.1 * jax.random.normal(ks[6], (out,), jnp.float32),
        "b2": 0.1 * jax.random.normal(ks[7], (out,), jnp.float32),
        "m2": 0.05 * jnp.cos(jnp.arange(out, dtype=jnp.float32)),
        "v2": 0.5 + 0.1 * jnp.arange(out, dtype=jnp.float32) / out,
    }


if __name__ == "__main__":
    N, INN, OUT, H, W = 2, 4, 8, 16, 16

    key = jax.random.PRNGKey(0)
    kx, kp = jax.random.split(key)
    x = jax.random.normal(kx, (N, INN, H, W), jnp.float32)   # NCHW like PyTorch
    params = init_params(kp, INN, OUT)
    prep = prepare_params(params)                            # one-time weight/BN prep

    out = jet_dwn_forward(x, prep)
    out = jax.block_until_ready(out)

    ref = ref_forward(x, params)
    assert out.shape == (N, OUT, H, W)
    assert jnp.allclose(out, ref, rtol=1e-4, atol=1e-4), "mismatch vs reference"

    print("KERNEL_OK")
</pallas_src>

<mosaic_0001>
module attributes {stable_mosaic.version = 11 : i64} {
  func.func @jet_dwn_kernel(%arg0: i32, %arg1: memref<2x4x256xf32, #tpu.memory_space<vmem>>, %arg2: memref<8x36xf32, #tpu.memory_space<vmem>>, %arg3: memref<8x1xf32, #tpu.memory_space<vmem>>, %arg4: memref<8x1xf32, #tpu.memory_space<vmem>>, %arg5: memref<8x72xf32, #tpu.memory_space<vmem>>, %arg6: memref<8x1xf32, #tpu.memory_space<vmem>>, %arg7: memref<8x1xf32, #tpu.memory_space<vmem>>, %arg8: memref<2x8x256xf32, #tpu.memory_space<vmem>>) attributes {dimension_semantics = [#tpu.dimension_semantics<parallel>], iteration_bounds = array<i64: 1>, scalar_prefetch = 0 : i64, scratch_operands = 0 : i64, tpu.core_type = #tpu.core_type<tc>, window_params = [{transform_indices = @transform_0, window_bounds = array<i64: 2, 4, 256>}, {pipeline_mode = #tpu.pipeline_mode<synchronous>, transform_indices = @transform_1, window_bounds = array<i64: 8, 36>}, {pipeline_mode = #tpu.pipeline_mode<synchronous>, transform_indices = @transform_2, window_bounds = array<i64: 8, 1>}, {pipeline_mode = #tpu.pipeline_mode<synchronous>, transform_indices = @transform_3, window_bounds = array<i64: 8, 1>}, {pipeline_mode = #tpu.pipeline_mode<synchronous>, transform_indices = @transform_4, window_bounds = array<i64: 8, 72>}, {pipeline_mode = #tpu.pipeline_mode<synchronous>, transform_indices = @transform_5, window_bounds = array<i64: 8, 1>}, {pipeline_mode = #tpu.pipeline_mode<synchronous>, transform_indices = @transform_6, window_bounds = array<i64: 8, 1>}, {transform_indices = @transform_7, window_bounds = array<i64: 2, 8, 256>}]} {
    %0 = tpu.iota {dimensions = array<i32: 1>} : vector<1x256xi32>
    %c16_i32 = arith.constant 16 : i32
    %c0_i32 = arith.constant 0 : i32
    %1 = arith.cmpi eq, %c16_i32, %c0_i32 : i32
    %c1_i32 = arith.constant 1 : i32
    %2 = arith.select %1, %c1_i32, %c16_i32 : i32
    %3 = vector.broadcast %2 : i32 to vector<1x256xi32>
    %4 = arith.remsi %0, %3 : vector<1x256xi32>
    %c0_i32_0 = arith.constant 0 : i32
    %5 = vector.broadcast %c0_i32_0 : i32 to vector<1x256xi32>
    %6 = arith.cmpi ne, %4, %5 : vector<1x256xi32>
    %c0_i32_1 = arith.constant 0 : i32
    %7 = vector.broadcast %c0_i32_1 : i32 to vector<1x256xi32>
    %8 = arith.cmpi slt, %4, %7 : vector<1x256xi32>
    %c0_i32_2 = arith.constant 0 : i32
    %9 = arith.cmpi slt, %2, %c0_i32_2 : i32
    %10 = vector.broadcast %9 : i1 to vector<1x256xi1>
    %11 = vector.broadcast %10 : vector<1x256xi1> to vector<1x256xi1>
    %12 = arith.xori %8, %11 : vector<1x256xi1>
    %13 = arith.andi %12, %6 : vector<1x256xi1>
    %14 = vector.broadcast %2 : i32 to vector<1x256xi32>
    %15 = arith.addi %4, %14 : vector<1x256xi32>
    %16 = arith.select %13, %15, %4 : vector<1x256xi1>, vector<1x256xi32>
    %c0_i32_3 = arith.constant 0 : i32
    %17 = vector.broadcast %c0_i32_3 : i32 to vector<1x256xi32>
    %18 = arith.cmpi eq, %16, %17 : vector<1x256xi32>
    %c15_i32 = arith.constant 15 : i32
    %19 = vector.broadcast %c15_i32 : i32 to vector<1x256xi32>
    %20 = arith.cmpi eq, %16, %19 : vector<1x256xi32>
    %c0 = arith.constant 0 : index
    %c0_4 = arith.constant 0 : index
    %c0_5 = arith.constant 0 : index
    %21 = vector.load %arg1[%c0, %c0_4, %c0_5] : memref<2x4x256xf32, #tpu.memory_space<vmem>>, vector<1x4x256xf32>
    %22 = vector.shape_cast %21 : vector<1x4x256xf32> to vector<4x256xf32>
    %cst = arith.constant 0.000000e+00 : f32
    %23 = vector.broadcast %cst : f32 to vector<4x17xf32>
    %24 = tpu.concatenate %23, %22, %23 in 1 : vector<4x17xf32>, vector<4x256xf32>, vector<4x17xf32> -> vector<4x290xf32>
    %25 = vector.extract_strided_slice %24 {offsets = [0, 0], sizes = [4, 256], strides = [1, 1]} : vector<4x290xf32> to vector<4x256xf32>
    %cst_6 = arith.constant 0.000000e+00 : f32
    %26 = vector.shape_cast %18 : vector<1x256xi1> to vector<1x256xi1>
    %27 = vector.broadcast %26 : vector<1x256xi1> to vector<4x256xi1>
    %28 = vector.broadcast %cst_6 : f32 to vector<4x256xf32>
    %29 = arith.select %27, %28, %25 : vector<4x256xi1>, vector<4x256xf32>
    %30 = vector.extract_strided_slice %24 {offsets = [0, 1], sizes = [4, 256], strides = [1, 1]} : vector<4x290xf32> to vector<4x256xf32>
    %31 = vector.extract_strided_slice %24 {offsets = [0, 2], sizes = [4, 256], strides = [1, 1]} : vector<4x290xf32> to vector<4x256xf32>
    %cst_7 = arith.constant 0.000000e+00 : f32
    %32 = vector.shape_cast %20 : vector<1x256xi1> to vector<1x256xi1>
    %33 = vector.broadcast %32 : vector<1x256xi1> to vector<4x256xi1>
    %34 = vector.broadcast %cst_7 : f32 to vector<4x256xf32>
    %35 = arith.select %33, %34, %31 : vector<4x256xi1>, vector<4x256xf32>
    %36 = vector.extract_strided_slice %24 {offsets = [0, 16], sizes = [4, 256], strides = [1, 1]} : vector<4x290xf32> to vector<4x256xf32>
    %cst_8 = arith.constant 0.000000e+00 : f32
    %37 = vector.shape_cast %18 : vector<1x256xi1> to vector<1x256xi1>
    %38 = vector.broadcast %37 : vector<1x256xi1> to vector<4x256xi1>
    %39 = vector.broadcast %cst_8 : f32 to vector<4x256xf32>
    %40 = arith.select %38, %39, %36 : vector<4x256xi1>, vector<4x256xf32>
    %41 = vector.extract_strided_slice %24 {offsets = [0, 17], sizes = [4, 256], strides = [1, 1]} : vector<4x290xf32> to vector<4x256xf32>
    %42 = vector.extract_strided_slice %24 {offsets = [0, 18], sizes = [4, 256], strides = [1, 1]} : vector<4x290xf32> to vector<4x256xf32>
    %cst_9 = arith.constant 0.000000e+00 : f32
    %43 = vector.shape_cast %20 : vector<1x256xi1> to vector<1x256xi1>
    %44 = vector.broadcast %43 : vector<1x256xi1> to vector<4x256xi1>
    %45 = vector.broadcast %cst_9 : f32 to vector<4x256xf32>
    %46 = arith.select %44, %45, %42 : vector<4x256xi1>, vector<4x256xf32>
    %47 = vector.extract_strided_slice %24 {offsets = [0, 32], sizes = [4, 256], strides = [1, 1]} : vector<4x290xf32> to vector<4x256xf32>
    %cst_10 = arith.constant 0.000000e+00 : f32
    %48 = vector.shape_cast %18 : vector<1x256xi1> to vector<1x256xi1>
    %49 = vector.broadcast %48 : vector<1x256xi1> to vector<4x256xi1>
    %50 = vector.broadcast %cst_10 : f32 to vector<4x256xf32>
    %51 = arith.select %49, %50, %47 : vector<4x256xi1>, vector<4x256xf32>
    %52 = vector.extract_strided_slice %24 {offsets = [0, 33], sizes = [4, 256], strides = [1, 1]} : vector<4x290xf32> to vector<4x256xf32>
    %53 = vector.extract_strided_slice %24 {offsets = [0, 34], sizes = [4, 256], strides = [1, 1]} : vector<4x290xf32> to vector<4x256xf32>
    %cst_11 = arith.constant 0.000000e+00 : f32
    %54 = vector.shape_cast %20 : vector<1x256xi1> to vector<1x256xi1>
    %55 = vector.broadcast %54 : vector<1x256xi1> to vector<4x256xi1>
    %56 = vector.broadcast %cst_11 : f32 to vector<4x256xf32>
    %57 = arith.select %55, %56, %53 : vector<4x256xi1>, vector<4x256xf32>
    %58 = tpu.concatenate %29, %30, %35, %40, %41, %46, %51, %52, %57 in 0 : vector<4x256xf32>, vector<4x256xf32>, vector<4x256xf32>, vector<4x256xf32>, vector<4x256xf32>, vector<4x256xf32>, vector<4x256xf32>, vector<4x256xf32>, vector<4x256xf32> -> vector<36x256xf32>
    %c0_12 = arith.constant 0 : index
    %c0_13 = arith.constant 0 : index
    %59 = vector.load %arg2[%c0_12, %c0_13] : memref<8x36xf32, #tpu.memory_space<vmem>>, vector<8x36xf32>
    %cst_14 = arith.constant dense<0.000000e+00> : vector<8x256xf32>
    %60 = tpu.matmul %59, %58, %cst_14 {dimension_numbers = #tpu.dot_dimension_numbers<[1], [0], [0], [1], [0, 0, 1, 1], [], []>} : vector<8x36xf32>, vector<36x256xf32>, vector<8x256xf32> -> vector<8x256xf32>
    %c0_15 = arith.constant 0 : index
    %c0_16 = arith.constant 0 : index
    %61 = vector.load %arg3[%c0_15, %c0_16] : memref<8x1xf32, #tpu.memory_space<vmem>>, vector<8x1xf32>
    %62 = vector.broadcast %61 : vector<8x1xf32> to vector<8x256xf32>
    %63 = arith.mulf %60, %62 : vector<8x256xf32>
    %c0_17 = arith.constant 0 : index
    %c0_18 = arith.constant 0 : index
    %64 = vector.load %arg4[%c0_17, %c0_18] : memref<8x1xf32, #tpu.memory_space<vmem>>, vector<8x1xf32>
    %65 = vector.broadcast %64 : vector<8x1xf32> to vector<8x256xf32>
    %66 = arith.addf %63, %65 : vector<8x256xf32>
    %cst_19 = arith.constant 0.000000e+00 : f32
    %67 = vector.broadcast %cst_19 : f32 to vector<8x256xf32>
    %68 = arith.maximumf %66, %67 : vector<8x256xf32>
    %cst_20 = arith.constant 0.000000e+00 : f32
    %69 = vector.broadcast %cst_20 : f32 to vector<8x17xf32>
    %70 = tpu.concatenate %69, %68, %69 in 1 : vector<8x17xf32>, vector<8x256xf32>, vector<8x17xf32> -> vector<8x290xf32>
    %71 = vector.extract_strided_slice %70 {offsets = [0, 0], sizes = [8, 256], strides = [1, 1]} : vector<8x290xf32> to vector<8x256xf32>
    %cst_21 = arith.constant 0.000000e+00 : f32
    %72 = vector.shape_cast %18 : vector<1x256xi1> to vector<1x256xi1>
    %73 = vector.broadcast %72 : vector<1x256xi1> to vector<8x256xi1>
    %74 = vector.broadcast %cst_21 : f32 to vector<8x256xf32>
    %75 = arith.select %73, %74, %71 : vector<8x256xi1>, vector<8x256xf32>
    %76 = vector.extract_strided_slice %70 {offsets = [0, 1], sizes = [8, 256], strides = [1, 1]} : vector<8x290xf32> to vector<8x256xf32>
    %77 = vector.extract_strided_slice %70 {offsets = [0, 2], sizes = [8, 256], strides = [1, 1]} : vector<8x290xf32> to vector<8x256xf32>
    %cst_22 = arith.constant 0.000000e+00 : f32
    %78 = vector.shape_cast %20 : vector<1x256xi1> to vector<1x256xi1>
    %79 = vector.broadcast %78 : vector<1x256xi1> to vector<8x256xi1>
    %80 = vector.broadcast %cst_22 : f32 to vector<8x256xf32>
    %81 = arith.select %79, %80, %77 : vector<8x256xi1>, vector<8x256xf32>
    %82 = vector.extract_strided_slice %70 {offsets = [0, 16], sizes = [8, 256], strides = [1, 1]} : vector<8x290xf32> to vector<8x256xf32>
    %cst_23 = arith.constant 0.000000e+00 : f32
    %83 = vector.shape_cast %18 : vector<1x256xi1> to vector<1x256xi1>
    %84 = vector.broadcast %83 : vector<1x256xi1> to vector<8x256xi1>
    %85 = vector.broadcast %cst_23 : f32 to vector<8x256xf32>
    %86 = arith.select %84, %85, %82 : vector<8x256xi1>, vector<8x256xf32>
    %87 = vector.extract_strided_slice %70 {offsets = [0, 17], sizes = [8, 256], strides = [1, 1]} : vector<8x290xf32> to vector<8x256xf32>
    %88 = vector.extract_strided_slice %70 {offsets = [0, 18], sizes = [8, 256], strides = [1, 1]} : vector<8x290xf32> to vector<8x256xf32>
    %cst_24 = arith.constant 0.000000e+00 : f32
    %89 = vector.shape_cast %20 : vector<1x256xi1> to vector<1x256xi1>
    %90 = vector.broadcast %89 : vector<1x256xi1> to vector<8x256xi1>
    %91 = vector.broadcast %cst_24 : f32 to vector<8x256xf32>
    %92 = arith.select %90, %91, %88 : vector<8x256xi1>, vector<8x256xf32>
    %93 = vector.extract_strided_slice %70 {offsets = [0, 32], sizes = [8, 256], strides = [1, 1]} : vector<8x290xf32> to vector<8x256xf32>
    %cst_25 = arith.constant 0.000000e+00 : f32
    %94 = vector.shape_cast %18 : vector<1x256xi1> to vector<1x256xi1>
    %95 = vector.broadcast %94 : vector<1x256xi1> to vector<8x256xi1>
    %96 = vector.broadcast %cst_25 : f32 to vector<8x256xf32>
    %97 = arith.select %95, %96, %93 : vector<8x256xi1>, vector<8x256xf32>
    %98 = vector.extract_strided_slice %70 {offsets = [0, 33], sizes = [8, 256], strides = [1, 1]} : vector<8x290xf32> to vector<8x256xf32>
    %99 = vector.extract_strided_slice %70 {offsets = [0, 34], sizes = [8, 256], strides = [1, 1]} : vector<8x290xf32> to vector<8x256xf32>
    %cst_26 = arith.constant 0.000000e+00 : f32
    %100 = vector.shape_cast %20 : vector<1x256xi1> to vector<1x256xi1>
    %101 = vector.broadcast %100 : vector<1x256xi1> to vector<8x256xi1>
    %102 = vector.broadcast %cst_26 : f32 to vector<8x256xf32>
    %103 = arith.select %101, %102, %99 : vector<8x256xi1>, vector<8x256xf32>
    %104 = tpu.concatenate %75, %76, %81, %86, %87, %92, %97, %98, %103 in 0 : vector<8x256xf32>, vector<8x256xf32>, vector<8x256xf32>, vector<8x256xf32>, vector<8x256xf32>, vector<8x256xf32>, vector<8x256xf32>, vector<8x256xf32>, vector<8x256xf32> -> vector<72x256xf32>
    %c0_27 = arith.constant 0 : index
    %c0_28 = arith.constant 0 : index
    %105 = vector.load %arg5[%c0_27, %c0_28] : memref<8x72xf32, #tpu.memory_space<vmem>>, vector<8x72xf32>
    %cst_29 = arith.constant dense<0.000000e+00> : vector<8x256xf32>
    %106 = tpu.matmul %105, %104, %cst_29 {dimension_numbers = #tpu.dot_dimension_numbers<[1], [0], [0], [1], [0, 0, 1, 1], [], []>} : vector<8x72xf32>, vector<72x256xf32>, vector<8x256xf32> -> vector<8x256xf32>
    %c0_30 = arith.constant 0 : index
    %c0_31 = arith.constant 0 : index
    %107 = vector.load %arg6[%c0_30, %c0_31] : memref<8x1xf32, #tpu.memory_space<vmem>>, vector<8x1xf32>
    %108 = vector.broadcast %107 : vector<8x1xf32> to vector<8x256xf32>
    %109 = arith.mulf %106, %108 : vector<8x256xf32>
    %c0_32 = arith.constant 0 : index
    %c0_33 = arith.constant 0 : index
    %110 = vector.load %arg7[%c0_32, %c0_33] : memref<8x1xf32, #tpu.memory_space<vmem>>, vector<8x1xf32>
    %111 = vector.broadcast %110 : vector<8x1xf32> to vector<8x256xf32>
    %112 = arith.addf %109, %111 : vector<8x256xf32>
    %cst_34 = arith.constant 0.000000e+00 : f32
    %113 = vector.broadcast %cst_34 : f32 to vector<8x256xf32>
    %114 = arith.maximumf %112, %113 : vector<8x256xf32>
    %c0_35 = arith.constant 0 : index
    %c0_36 = arith.constant 0 : index
    %c0_37 = arith.constant 0 : index
    %115 = vector.load %arg8[%c0_35, %c0_36, %c0_37] : memref<2x8x256xf32, #tpu.memory_space<vmem>>, vector<1x8x256xf32>
    %116 = vector.shape_cast %115 : vector<1x8x256xf32> to vector<8x256xf32>
    %117 = vector.shape_cast %114 : vector<8x256xf32> to vector<1x8x256xf32>
    tpu.vector_store %arg8[%c0_35, %c0_36, %c0_37], %117 {strides = array<i32>} : memref<2x8x256xf32, #tpu.memory_space<vmem>>, vector<1x8x256xf32>,
    %c1 = arith.constant 1 : index
    %c0_38 = arith.constant 0 : index
    %c0_39 = arith.constant 0 : index
    %118 = vector.load %arg1[%c1, %c0_38, %c0_39] : memref<2x4x256xf32, #tpu.memory_space<vmem>>, vector<1x4x256xf32>
    %119 = vector.shape_cast %118 : vector<1x4x256xf32> to vector<4x256xf32>
    %cst_40 = arith.constant 0.000000e+00 : f32
    %120 = vector.broadcast %cst_40 : f32 to vector<4x17xf32>
    %121 = tpu.concatenate %120, %119, %120 in 1 : vector<4x17xf32>, vector<4x256xf32>, vector<4x17xf32> -> vector<4x290xf32>
    %122 = vector.extract_strided_slice %121 {offsets = [0, 0], sizes = [4, 256], strides = [1, 1]} : vector<4x290xf32> to vector<4x256xf32>
    %cst_41 = arith.constant 0.000000e+00 : f32
    %123 = vector.shape_cast %18 : vector<1x256xi1> to vector<1x256xi1>
    %124 = vector.broadcast %123 : vector<1x256xi1> to vector<4x256xi1>
    %125 = vector.broadcast %cst_41 : f32 to vector<4x256xf32>
    %126 = arith.select %124, %125, %122 : vector<4x256xi1>, vector<4x256xf32>
    %127 = vector.extract_strided_slice %121 {offsets = [0, 1], sizes = [4, 256], strides = [1, 1]} : vector<4x290xf32> to vector<4x256xf32>
    %128 = vector.extract_strided_slice %121 {offsets = [0, 2], sizes = [4, 256], strides = [1, 1]} : vector<4x290xf32> to vector<4x256xf32>
    %cst_42 = arith.constant 0.000000e+00 : f32
    %129 = vector.shape_cast %20 : vector<1x256xi1> to vector<1x256xi1>
    %130 = vector.broadcast %129 : vector<1x256xi1> to vector<4x256xi1>
    %131 = vector.broadcast %cst_42 : f32 to vector<4x256xf32>
    %132 = arith.select %130, %131, %128 : vector<4x256xi1>, vector<4x256xf32>
    %133 = vector.extract_strided_slice %121 {offsets = [0, 16], sizes = [4, 256], strides = [1, 1]} : vector<4x290xf32> to vector<4x256xf32>
    %cst_43 = arith.constant 0.000000e+00 : f32
    %134 = vector.shape_cast %18 : vector<1x256xi1> to vector<1x256xi1>
    %135 = vector.broadcast %134 : vector<1x256xi1> to vector<4x256xi1>
    %136 = vector.broadcast %cst_43 : f32 to vector<4x256xf32>
    %137 = arith.select %135, %136, %133 : vector<4x256xi1>, vector<4x256xf32>
    %138 = vector.extract_strided_slice %121 {offsets = [0, 17], sizes = [4, 256], strides = [1, 1]} : vector<4x290xf32> to vector<4x256xf32>
    %139 = vector.extract_strided_slice %121 {offsets = [0, 18], sizes = [4, 256], strides = [1, 1]} : vector<4x290xf32> to vector<4x256xf32>
    %cst_44 = arith.constant 0.000000e+00 : f32
    %140 = vector.shape_cast %20 : vector<1x256xi1> to vector<1x256xi1>
    %141 = vector.broadcast %140 : vector<1x256xi1> to vector<4x256xi1>
    %142 = vector.broadcast %cst_44 : f32 to vector<4x256xf32>
    %143 = arith.select %141, %142, %139 : vector<4x256xi1>, vector<4x256xf32>
    %144 = vector.extract_strided_slice %121 {offsets = [0, 32], sizes = [4, 256], strides = [1, 1]} : vector<4x290xf32> to vector<4x256xf32>
    %cst_45 = arith.constant 0.000000e+00 : f32
    %145 = vector.shape_cast %18 : vector<1x256xi1> to vector<1x256xi1>
    %146 = vector.broadcast %145 : vector<1x256xi1> to vector<4x256xi1>
    %147 = vector.broadcast %cst_45 : f32 to vector<4x256xf32>
    %148 = arith.select %146, %147, %144 : vector<4x256xi1>, vector<4x256xf32>
    %149 = vector.extract_strided_slice %121 {offsets = [0, 33], sizes = [4, 256], strides = [1, 1]} : vector<4x290xf32> to vector<4x256xf32>
    %150 = vector.extract_strided_slice %121 {offsets = [0, 34], sizes = [4, 256], strides = [1, 1]} : vector<4x290xf32> to vector<4x256xf32>
    %cst_46 = arith.constant 0.000000e+00 : f32
    %151 = vector.shape_cast %20 : vector<1x256xi1> to vector<1x256xi1>
    %152 = vector.broadcast %151 : vector<1x256xi1> to vector<4x256xi1>
    %153 = vector.broadcast %cst_46 : f32 to vector<4x256xf32>
    %154 = arith.select %152, %153, %150 : vector<4x256xi1>, vector<4x256xf32>
    %155 = tpu.concatenate %126, %127, %132, %137, %138, %143, %148, %149, %154 in 0 : vector<4x256xf32>, vector<4x256xf32>, vector<4x256xf32>, vector<4x256xf32>, vector<4x256xf32>, vector<4x256xf32>, vector<4x256xf32>, vector<4x256xf32>, vector<4x256xf32> -> vector<36x256xf32>
    %c0_47 = arith.constant 0 : index
    %c0_48 = arith.constant 0 : index
    %156 = vector.load %arg2[%c0_47, %c0_48] : memref<8x36xf32, #tpu.memory_space<vmem>>, vector<8x36xf32>
    %cst_49 = arith.constant dense<0.000000e+00> : vector<8x256xf32>
    %157 = tpu.matmul %156, %155, %cst_49 {dimension_numbers = #tpu.dot_dimension_numbers<[1], [0], [0], [1], [0, 0, 1, 1], [], []>} : vector<8x36xf32>, vector<36x256xf32>, vector<8x256xf32> -> vector<8x256xf32>
    %c0_50 = arith.constant 0 : index
    %c0_51 = arith.constant 0 : index
    %158 = vector.load %arg3[%c0_50, %c0_51] : memref<8x1xf32, #tpu.memory_space<vmem>>, vector<8x1xf32>
    %159 = vector.broadcast %158 : vector<8x1xf32> to vector<8x256xf32>
    %160 = arith.mulf %157, %159 : vector<8x256xf32>
    %c0_52 = arith.constant 0 : index
    %c0_53 = arith.constant 0 : index
    %161 = vector.load %arg4[%c0_52, %c0_53] : memref<8x1xf32, #tpu.memory_space<vmem>>, vector<8x1xf32>
    %162 = vector.broadcast %161 : vector<8x1xf32> to vector<8x256xf32>
    %163 = arith.addf %160, %162 : vector<8x256xf32>
    %cst_54 = arith.constant 0.000000e+00 : f32
    %164 = vector.broadcast %cst_54 : f32 to vector<8x256xf32>
    %165 = arith.maximumf %163, %164 : vector<8x256xf32>
    %cst_55 = arith.constant 0.000000e+00 : f32
    %166 = vector.broadcast %cst_55 : f32 to vector<8x17xf32>
    %167 = tpu.concatenate %166, %165, %166 in 1 : vector<8x17xf32>, vector<8x256xf32>, vector<8x17xf32> -> vector<8x290xf32>
    %168 = vector.extract_strided_slice %167 {offsets = [0, 0], sizes = [8, 256], strides = [1, 1]} : vector<8x290xf32> to vector<8x256xf32>
    %cst_56 = arith.constant 0.000000e+00 : f32
    %169 = vector.shape_cast %18 : vector<1x256xi1> to vector<1x256xi1>
    %170 = vector.broadcast %169 : vector<1x256xi1> to vector<8x256xi1>
    %171 = vector.broadcast %cst_56 : f32 to vector<8x256xf32>
    %172 = arith.select %170, %171, %168 : vector<8x256xi1>, vector<8x256xf32>
    %173 = vector.extract_strided_slice %167 {offsets = [0, 1], sizes = [8, 256], strides = [1, 1]} : vector<8x290xf32> to vector<8x256xf32>
    %174 = vector.extract_strided_slice %167 {offsets = [0, 2], sizes = [8, 256], strides = [1, 1]} : vector<8x290xf32> to vector<8x256xf32>
    %cst_57 = arith.constant 0.000000e+00 : f32
    %175 = vector.shape_cast %20 : vector<1x256xi1> to vector<1x256xi1>
    %176 = vector.broadcast %175 : vector<1x256xi1> to vector<8x256xi1>
    %177 = vector.broadcast %cst_57 : f32 to vector<8x256xf32>
    %178 = arith.select %176, %177, %174 : vector<8x256xi1>, vector<8x256xf32>
    %179 = vector.extract_strided_slice %167 {offsets = [0, 16], sizes = [8, 256], strides = [1, 1]} : vector<8x290xf32> to vector<8x256xf32>
    %cst_58 = arith.constant 0.000000e+00 : f32
    %180 = vector.shape_cast %18 : vector<1x256xi1> to vector<1x256xi1>
    %181 = vector.broadcast %180 : vector<1x256xi1> to vector<8x256xi1>
    %182 = vector.broadcast %cst_58 : f32 to vector<8x256xf32>
    %183 = arith.select %181, %182, %179 : vector<8x256xi1>, vector<8x256xf32>
    %184 = vector.extract_strided_slice %167 {offsets = [0, 17], sizes = [8, 256], strides = [1, 1]} : vector<8x290xf32> to vector<8x256xf32>
    %185 = vector.extract_strided_slice %167 {offsets = [0, 18], sizes = [8, 256], strides = [1, 1]} : vector<8x290xf32> to vector<8x256xf32>
    %cst_59 = arith.constant 0.000000e+00 : f32
    %186 = vector.shape_cast %20 : vector<1x256xi1> to vector<1x256xi1>
    %187 = vector.broadcast %186 : vector<1x256xi1> to vector<8x256xi1>
    %188 = vector.broadcast %cst_59 : f32 to vector<8x256xf32>
    %189 = arith.select %187, %188, %185 : vector<8x256xi1>, vector<8x256xf32>
    %190 = vector.extract_strided_slice %167 {offsets = [0, 32], sizes = [8, 256], strides = [1, 1]} : vector<8x290xf32> to vector<8x256xf32>
    %cst_60 = arith.constant 0.000000e+00 : f32
    %191 = vector.shape_cast %18 : vector<1x256xi1> to vector<1x256xi1>
    %192 = vector.broadcast %191 : vector<1x256xi1> to vector<8x256xi1>
    %193 = vector.broadcast %cst_60 : f32 to vector<8x256xf32>
    %194 = arith.select %192, %193, %190 : vector<8x256xi1>, vector<8x256xf32>
    %195 = vector.extract_strided_slice %167 {offsets = [0, 33], sizes = [8, 256], strides = [1, 1]} : vector<8x290xf32> to vector<8x256xf32>
    %196 = vector.extract_strided_slice %167 {offsets = [0, 34], sizes = [8, 256], strides = [1, 1]} : vector<8x290xf32> to vector<8x256xf32>
    %cst_61 = arith.constant 0.000000e+00 : f32
    %197 = vector.shape_cast %20 : vector<1x256xi1> to vector<1x256xi1>
    %198 = vector.broadcast %197 : vector<1x256xi1> to vector<8x256xi1>
    %199 = vector.broadcast %cst_61 : f32 to vector<8x256xf32>
    %200 = arith.select %198, %199, %196 : vector<8x256xi1>, vector<8x256xf32>
    %201 = tpu.concatenate %172, %173, %178, %183, %184, %189, %194, %195, %200 in 0 : vector<8x256xf32>, vector<8x256xf32>, vector<8x256xf32>, vector<8x256xf32>, vector<8x256xf32>, vector<8x256xf32>, vector<8x256xf32>, vector<8x256xf32>, vector<8x256xf32> -> vector<72x256xf32>
    %c0_62 = arith.constant 0 : index
    %c0_63 = arith.constant 0 : index
    %202 = vector.load %arg5[%c0_62, %c0_63] : memref<8x72xf32, #tpu.memory_space<vmem>>, vector<8x72xf32>
    %cst_64 = arith.constant dense<0.000000e+00> : vector<8x256xf32>
    %203 = tpu.matmul %202, %201, %cst_64 {dimension_numbers = #tpu.dot_dimension_numbers<[1], [0], [0], [1], [0, 0, 1, 1], [], []>} : vector<8x72xf32>, vector<72x256xf32>, vector<8x256xf32> -> vector<8x256xf32>
    %c0_65 = arith.constant 0 : index
    %c0_66 = arith.constant 0 : index
    %204 = vector.load %arg6[%c0_65, %c0_66] : memref<8x1xf32, #tpu.memory_space<vmem>>, vector<8x1xf32>
    %205 = vector.broadcast %204 : vector<8x1xf32> to vector<8x256xf32>
    %206 = arith.mulf %203, %205 : vector<8x256xf32>
    %c0_67 = arith.constant 0 : index
    %c0_68 = arith.constant 0 : index
    %207 = vector.load %arg7[%c0_67, %c0_68] : memref<8x1xf32, #tpu.memory_space<vmem>>, vector<8x1xf32>
    %208 = vector.broadcast %207 : vector<8x1xf32> to vector<8x256xf32>
    %209 = arith.addf %206, %208 : vector<8x256xf32>
    %cst_69 = arith.constant 0.000000e+00 : f32
    %210 = vector.broadcast %cst_69 : f32 to vector<8x256xf32>
    %211 = arith.maximumf %209, %210 : vector<8x256xf32>
    %c1_70 = arith.constant 1 : index
    %c0_71 = arith.constant 0 : index
    %c0_72 = arith.constant 0 : index
    %212 = vector.load %arg8[%c1_70, %c0_71, %c0_72] : memref<2x8x256xf32, #tpu.memory_space<vmem>>, vector<1x8x256xf32>
    %213 = vector.shape_cast %212 : vector<1x8x256xf32> to vector<8x256xf32>
    %214 = vector.shape_cast %211 : vector<8x256xf32> to vector<1x8x256xf32>
    tpu.vector_store %arg8[%c1_70, %c0_71, %c0_72], %214 {strides = array<i32>} : memref<2x8x256xf32, #tpu.memory_space<vmem>>, vector<1x8x256xf32>,
    return
  }
  func.func @transform_0(%arg0: i32) -> (i32, i32, i32) {
    %c0_i32 = arith.constant 0 : i32
    %c0_i32_0 = arith.constant 0 : i32
    %c0_i32_1 = arith.constant 0 : i32
    return %arg0, %c0_i32, %c0_i32_0 : i32, i32, i32
  }
  func.func @transform_1(%arg0: i32) -> (i32, i32) {
    %c0_i32 = arith.constant 0 : i32
    %c0_i32_0 = arith.constant 0 : i32
    %c0_i32_1 = arith.constant 0 : i32
    return %c0_i32, %c0_i32_0 : i32, i32
  }
  func.func @transform_2(%arg0: i32) -> (i32, i32) {
    %c0_i32 = arith.constant 0 : i32
    %c0_i32_0 = arith.constant 0 : i32
    %c0_i32_1 = arith.constant 0 : i32
    return %c0_i32, %c0_i32_0 : i32, i32
  }
  func.func @transform_3(%arg0: i32) -> (i32, i32) {
    %c0_i32 = arith.constant 0 : i32
    %c0_i32_0 = arith.constant 0 : i32
    %c0_i32_1 = arith.constant 0 : i32
    return %c0_i32, %c0_i32_0 : i32, i32
  }
  func.func @transform_4(%arg0: i32) -> (i32, i32) {
    %c0_i32 = arith.constant 0 : i32
    %c0_i32_0 = arith.constant 0 : i32
    %c0_i32_1 = arith.constant 0 : i32
    return %c0_i32, %c0_i32_0 : i32, i32
  }
  func.func @transform_5(%arg0: i32) -> (i32, i32) {
    %c0_i32 = arith.constant 0 : i32
    %c0_i32_0 = arith.constant 0 : i32
    %c0_i32_1 = arith.constant 0 : i32
    return %c0_i32, %c0_i32_0 : i32, i32
  }
  func.func @transform_6(%arg0: i32) -> (i32, i32) {
    %c0_i32 = arith.constant 0 : i32
    %c0_i32_0 = arith.constant 0 : i32
    %c0_i32_1 = arith.constant 0 : i32
    return %c0_i32, %c0_i32_0 : i32, i32
  }
  func.func @transform_7(%arg0: i32) -> (i32, i32, i32) {
    %c0_i32 = arith.constant 0 : i32
    %c0_i32_0 = arith.constant 0 : i32
    %c0_i32_1 = arith.constant 0 : i32
    return %arg0, %c0_i32, %c0_i32_0 : i32, i32, i32
  }
}

</mosaic_0001>

<llo_original>
// kernel: jet_dwn_forward.1
$region0: #{jet_dwn_forward.1}
  #allocation0 [shape = 'u32[]', space=smem, size = 0x4, offset = 0x4, fixed_abs, tag = 'smem constant byte address 0x4 - core index']
  #allocation1 [shape = 'u32[144,128]{1,0:T(1,128)}', space=vmem, size = 0x12000, scoped, tag = 'internal scratch']
  %s0 = inlined_call_operand.vmem [shape: f32[2,4,256], index: 0, kind: input, shape index: {}]
  %s1 = inlined_call_operand.vmem [shape: f32[8,36], index: 1, kind: input, shape index: {}]
  %s2 = inlined_call_operand.vmem [shape: f32[8,1], index: 2, kind: input, shape index: {}]
  %s3 = inlined_call_operand.vmem [shape: f32[8,1], index: 3, kind: input, shape index: {}]
  %s4 = inlined_call_operand.vmem [shape: f32[8,72], index: 4, kind: input, shape index: {}]
  %s5 = inlined_call_operand.vmem [shape: f32[8,1], index: 5, kind: input, shape index: {}]
  %s6 = inlined_call_operand.vmem [shape: f32[8,1], index: 6, kind: input, shape index: {}]
  %s7 = inlined_call_operand.vmem [shape: f32[2,8,256], index: 7, kind: output, shape index: {}]
  %s8 = sld [smem:[#allocation0]]
  $region38: #{jet_dwn_forward.1} parent=0
    _
  %s10 = ssub.s32 1, %s8
  %s11 = scalar_select 0, %s10, %s8
  // Predicated region
  $region2: #{jet_dwn_forward.1} parent=0 // pred_check
    _
  $region3: #{jet_dwn_forward.1} parent=0 // pred_check_branch
    %13 = sbr.rel (0) target = $region5
  $region4: #{jet_dwn_forward.1} parent=0 // pred_region
    _
  $region5: #{jet_dwn_forward.1} parent=0 // pred_fallthru
    _
  // Predicated region
  $region6: #{jet_dwn_forward.1} parent=0 // pred_check
    _
  $region7: #{jet_dwn_forward.1} parent=0 // pred_check_branch
    %15 = sbr.rel (0) target = $region9
  $region8: #{jet_dwn_forward.1} parent=0 // pred_region
    _
  $region9: #{jet_dwn_forward.1} parent=0 // pred_fallthru
    _
  // Predicated region
  $region10: #{jet_dwn_forward.1} parent=0 // pred_check
    _
  $region11: #{jet_dwn_forward.1} parent=0 // pred_check_branch
    %17 = sbr.rel (0) target = $region13
  $region12: #{jet_dwn_forward.1} parent=0 // pred_region
    _
  $region13: #{jet_dwn_forward.1} parent=0 // pred_fallthru
    _
  // Predicated region
  $region14: #{jet_dwn_forward.1} parent=0 // pred_check
    _
  $region15: #{jet_dwn_forward.1} parent=0 // pred_check_branch
    %19 = sbr.rel (0) target = $region17
  $region16: #{jet_dwn_forward.1} parent=0 // pred_region
    _
  $region17: #{jet_dwn_forward.1} parent=0 // pred_fallthru
    _
  // Predicated region
  $region18: #{jet_dwn_forward.1} parent=0 // pred_check
    _
  $region19: #{jet_dwn_forward.1} parent=0 // pred_check_branch
    %21 = sbr.rel (0) target = $region21
  $region20: #{jet_dwn_forward.1} parent=0 // pred_region
    _
  $region21: #{jet_dwn_forward.1} parent=0 // pred_fallthru
    _
  // Predicated region
  $region22: #{jet_dwn_forward.1} parent=0 // pred_check
    _
  $region23: #{jet_dwn_forward.1} parent=0 // pred_check_branch
    %23 = sbr.rel (0) target = $region25
  $region24: #{jet_dwn_forward.1} parent=0 // pred_region
    _
  $region25: #{jet_dwn_forward.1} parent=0 // pred_fallthru
    _
  // Predicated region
  $region26: #{jet_dwn_forward.1} parent=0 // pred_check
    _
  $region27: #{jet_dwn_forward.1} parent=0 // pred_check_branch
    %25 = sbr.rel (0) target = $region29
  $region28: #{jet_dwn_forward.1} parent=0 // pred_region
    _
  $region29: #{jet_dwn_forward.1} parent=0 // pred_fallthru
    _
  %v26 = vlaneseq
  %v27 = vand.u32 %v26, 127
  %v28 = vadd.s32 %v27, 128
  %vm29 = vcmp.lt.s32.totalorder %v27, 0
  %v30 = vsub.s32 0, %v27
  %v31 = vsel %vm29, %v30, %v27
  %v32 = vshrl.u32 %v31, 4
  %v33 = vand.u32 %v31, 15
  %v34 = vsub.s32 0, %v33
  %v35 = vsel %vm29, %v34, %v33
  %vm36 = vcmp.lt.s32.totalorder %v28, 0
  %v37 = vsub.s32 0, %v28
  %v38 = vsel %vm36, %v37, %v28
  %v39 = vshrl.u32 %v38, 4
  %v40 = vand.u32 %v38, 15
  %v41 = vsub.s32 0, %v40
  %v42 = vsel %vm36, %v41, %v40
  %vm43 = vcmp.ne.s32.totalorder %v35, 0
  %vm44 = vcmp.ne.s32.totalorder %v42, 0
  %vm45 = vcmp.lt.s32.totalorder %v35, 0
  %vm46 = vcmp.lt.s32.totalorder %v42, 0
  %vm47 = vmand %vm45, %vm43
  %vm48 = vmand %vm46, %vm44
  %v49 = vadd.s32 %v35, 16
  %v50 = vadd.s32 %v42, 16
  %v51 = vsel %vm47, %v49, %v35
  %v52 = vsel %vm48, %v50, %v42
  %vm53 = vcmp.eq.s32.totalorder %v51, 0
  %vm54 = vcmp.eq.s32.totalorder %v52, 0
  %vm55 = vcmp.eq.s32.totalorder %v51, 15
  %vm56 = vcmp.eq.s32.totalorder %v52, 15
  %v57 = vld [vmem:[%s0] sm:$0xff]
  %v59 = vcombine.high %v57, %v57
  %60 = vrot.lane.b32.xlu0 %v57, 17
  %v61 = vpop.permute.xlu0 %60
  %62 = vrot.lane.b32.xlu0 %v59, 17
  %v63 = vpop.permute.xlu0 %62
  %vm64 = vcmask 138240
  %v65 = vsel %vm64, %v61, %v63
  %v69 = vsel %vm64, 0.0, %v61
  %v70 = vsel %vm64, %v63, 0.0
  %v71 = vsel %vm53, 1, 0
  %v72 = vsel %vm54, 1, 0
  %vm73 = vcmp.eq.s32.totalorder %v71, 1
  %vm74 = vcmp.eq.s32.totalorder %v72, 1
  %v75 = vsel %vm73, 0.0, %v69
  %v76 = vsel %vm74, 0.0, %v65
  %v77 = vsel %vm55, 1, 0
  %v78 = vsel %vm56, 1, 0
  %vm79 = vcmp.eq.s32.totalorder %v77, 1
  %vm80 = vcmp.eq.s32.totalorder %v78, 1
  %83 = vrot.lane.b32.xlu0 %v69, 126
  %v84 = vpop.permute.xlu0 %83
  %85 = vrot.lane.b32.xlu0 %v65, 126
  %v86 = vpop.permute.xlu0 %85
  %87 = vrot.lane.b32.xlu0 %v70, 126
  %v88 = vpop.permute.xlu0 %87
  %vm89 = vcmask 1031168
  %v90 = vsel %vm89, %v84, %v86
  %v91 = vsel %vm89, %v86, %v88
  %v94 = vsel %vm79, 0.0, %v90
  %v95 = vsel %vm80, 0.0, %v91
  %96 = vrot.lane.b32.xlu0 %v69, 112
  %v97 = vpop.permute.xlu0 %96
  %98 = vrot.lane.b32.xlu0 %v65, 112
  %v99 = vpop.permute.xlu0 %98
  %100 = vrot.lane.b32.xlu0 %v70, 112
  %v101 = vpop.permute.xlu0 %100
  %vm102 = vcmask 916480
  %v103 = vsel %vm102, %v97, %v99
  %v104 = vsel %vm102, %v99, %v101
  %v107 = vsel %vm73, 0.0, %v103
  %v108 = vsel %vm74, 0.0, %v104
  %109 = vrot.lane.b32.xlu0 %v69, 110
  %v110 = vpop.permute.xlu0 %109
  %111 = vrot.lane.b32.xlu0 %v65, 110
  %v112 = vpop.permute.xlu0 %111
  %113 = vrot.lane.b32.xlu0 %v70, 110
  %v114 = vpop.permute.xlu0 %113
  %vm115 = vcmask 900096
  %v116 = vsel %vm115, %v110, %v112
  %v117 = vsel %vm115, %v112, %v114
  %v120 = vsel %vm79, 0.0, %v116
  %v121 = vsel %vm80, 0.0, %v117
  %122 = vrot.lane.b32.xlu0 %v69, 96
  %v123 = vpop.permute.xlu0 %122
  %124 = vrot.lane.b32.xlu0 %v65, 96
  %v125 = vpop.permute.xlu0 %124
  %126 = vrot.lane.b32.xlu0 %v70, 96
  %v127 = vpop.permute.xlu0 %126
  %vm128 = vcmask 785408
  %v129 = vsel %vm128, %v123, %v125
  %v130 = vsel %vm128, %v125, %v127
  %v133 = vsel %vm73, 0.0, %v129
  %v134 = vsel %vm74, 0.0, %v130
  %135 = vrot.lane.b32.xlu0 %v69, 94
  %v136 = vpop.permute.xlu0 %135
  %137 = vrot.lane.b32.xlu0 %v65, 94
  %v138 = vpop.permute.xlu0 %137
  %139 = vrot.lane.b32.xlu0 %v70, 94
  %v140 = vpop.permute.xlu0 %139
  %vm141 = vcmask 769024
  %v142 = vsel %vm141, %v136, %v138
  %v143 = vsel %vm141, %v138, %v140
  %v146 = vsel %vm79, 0.0, %v142
  %v147 = vsel %vm80, 0.0, %v143
  %v148 = vrot.slane %v69, 4
  %v149 = vrot.slane %v65, 4
  %v150 = vrot.slane %v70, 4
  %151 = vrot.lane.b32.xlu0 %v148, 127
  %v152 = vpop.permute.xlu0 %151
  %153 = vrot.lane.b32.xlu0 %v149, 127
  %v154 = vpop.permute.xlu0 %153
  %155 = vrot.lane.b32.xlu0 %v150, 127
  %v156 = vpop.permute.xlu0 %155
  %vm157 = vcmask 1039360
  %v158 = vsel %vm157, %v152, %v154
  %v159 = vsel %vm157, %v154, %v156
  %v164 = vrot.slane %v107, 4
  %v165 = vrot.slane %v108, 4
  %168 = vrot.lane.b32.xlu0 %v69, 111
  %v169 = vpop.permute.xlu0 %168
  %170 = vrot.lane.b32.xlu0 %v65, 111
  %v171 = vpop.permute.xlu0 %170
  %172 = vrot.lane.b32.xlu0 %v70, 111
  %v173 = vpop.permute.xlu0 %172
  %vm174 = vcmask 908288
  %v175 = vsel %vm174, %v169, %v171
  %v176 = vsel %vm174, %v171, %v173
  %v181 = vrot.slane %v120, 4
  %v182 = vrot.slane %v121, 4
  %185 = vrot.lane.b32.xlu0 %v148, 95
  %v186 = vpop.permute.xlu0 %185
  %187 = vrot.lane.b32.xlu0 %v149, 95
  %v188 = vpop.permute.xlu0 %187
  %189 = vrot.lane.b32.xlu0 %v150, 95
  %v190 = vpop.permute.xlu0 %189
  %vm191 = vcmask 777216
  %v192 = vsel %vm191, %v186, %v188
  %v193 = vsel %vm191, %v188, %v190
  %vm196 = vcmask 1043456
  %v197 = vsel %vm196, %v75, %v158
  %v198 = vsel %vm196, %v76, %v159
  %v199 = vsel %vm196, %v94, %v164
  %v200 = vsel %vm196, %v95, %v165
  %v201 = vsel %vm196, %v175, %v181
  %v202 = vsel %vm196, %v176, %v182
  %v203 = vsel %vm196, %v133, %v192
  %v204 = vsel %vm196, %v134, %v193
  %v205 = vld [vmem:[%s1] sm:$0xff]
  %vm206 = vcmask 293888
  %v208 = vsel %vm206, %v205, 0
  %v211 = vsel %vm196, %v146, 0
  %v214 = vsel %vm196, %v147, 0
  %216 = vmatprep.subr.mxu0 %v198
  %217 = vmatpush1.msra.mxu0 %v197
  %218 = vmatprep.subr.mxu0 %v200
  %219 = vmatpush1.msra.mxu0 %v199
  %220 = vmatprep.subr.mxu0 %v202
  %221 = vmatpush1.msra.mxu0 %v201
  %222 = vmatprep.subr.mxu0 %v204
  %223 = vmatpush1.msra.mxu0 %v203
  %224 = vmatprep.subr.mxu0 %v214
  %225 = vmatpush1.msra.mxu0 %v211
  %226 = vmatprep.subr.mxu0 0.0
  %227 = vmatpush1.msra.mxu0 0.0
  %228 = vmatprep.subr.mxu0 0.0
  %229 = vmatpush1.msra.mxu0 0.0
  %230 = vmatprep.subr.mxu0 0.0
  %231 = vmatpush1.msra.mxu0 0.0
  %232 = vmatprep.subr.mxu0 0.0
  %233 = vmatpush1.msra.mxu0 0.0
  %234 = vmatprep.subr.mxu0 0.0
  %235 = vmatpush1.msra.mxu0 0.0
  %236 = vmatprep.subr.mxu0 0.0
  %237 = vmatpush1.msra.mxu0 0.0
  %238 = vmatprep.subr.mxu0 0.0
  %239 = vmatpush1.msra.mxu0 0.0
  %240 = vmatprep.subr.mxu0 0.0
  %241 = vmatpush1.msra.mxu0 0.0
  %242 = vmatprep.subr.mxu0 0.0
  %243 = vmatpush1.msra.mxu0 0.0
  %244 = vmatprep.subr.mxu0 0.0
  %245 = vmatpush1.msra.mxu0 0.0
  %246 = vmatprep.subr.mxu0 0.0
  %247 = vmatpush1.msra.mxu0 0.0
  %248 = vmatprep.subr.mxu0 0.0
  %249 = vmatpush1.msra.mxu0 0.0
  %250 = vmatprep.subr.mxu0 0.0
  %251 = vmatpush1.msra.mxu0 0.0
  %252 = vmatprep.subr.mxu0 0.0
  %253 = vmatpush1.msra.mxu0 0.0
  %254 = vmatprep.subr.mxu0 0.0
  %255 = vmatpush1.msra.mxu0 0.0
  %256 = vmatprep.subr.mxu0 0.0
  %257 = vmatpush1.msra.mxu0 0.0
  %258 = vmatprep.subr.mxu0 0.0
  %259 = vmatpush1.msra.mxu0 0.0
  %260 = vmatprep.subr.mxu0 0.0
  %261 = vmatpush1.msra.mxu0 0.0
  %262 = vmatprep.subr.mxu0 0.0
  %263 = vmatpush1.msra.mxu0 0.0
  %264 = vmatprep.subr.mxu0 0.0
  %265 = vmatpush1.msra.mxu0 0.0
  %266 = vmatprep.subr.mxu0 0.0
  %267 = vmatpush1.msra.mxu0 0.0
  %268 = vmatprep.subr.mxu0 0.0
  %269 = vmatpush1.msra.mxu0 0.0
  %270 = vmatprep.subr.mxu0 0.0
  %271 = vmatpush1.msra.mxu0 0.0
  %272 = vmatprep.subr.mxu0 0.0
  %273 = vmatpush1.msra.mxu0 0.0
  %274 = vmatprep.subr.mxu0 0.0
  %275 = vmatpush1.msra.mxu0 0.0
  %276 = vmatprep.subr.mxu0 0.0
  %277 = vmatpush1.msra.mxu0 0.0
  %278 = vmatprep.subr.mxu0 0.0
  %279 = vmatpush1.msra.mxu0 0.0
  %280 = vmatprep.mubr.f32.mxu0 0.0
  %281 = vmatmul.mubr.f32.gmra.mrb[0].mxu0 %v208
  %v282 = vpop.f32.mrb[0].mxu0
  %v283 = vadd.f32 0.0, %v282
  %v284 = vpop.f32.mrb[0].mxu0
  %v285 = vadd.f32 0.0, %v284
  %286 = vdwg.mxu0
  %v287 = vld [vmem:[%s2] sm:$0xff]
  %289 = vset.pattern.permute.xlu0 0
  %290 = vperm.xlu0 %289, %v287
  %v291 = vpop.permute.xlu0 %290
  %v293 = vmul.f32 %v283, %v291
  %v294 = vmul.f32 %v285, %v291
  %v295 = vld [vmem:[%s3] sm:$0xff]
  %297 = vset.pattern.permute.xlu0 0
  %298 = vperm.xlu0 %297, %v295
  %v299 = vpop.permute.xlu0 %298
  %v301 = vadd.f32 %v293, %v299
  %v302 = vadd.f32 %v294, %v299
  %v303 = vmax.f32 %v301, 0.0
  %v304 = vmax.f32 %v302, 0.0
  %307 = vrot.lane.b32.xlu0 %v303, 17
  %v308 = vpop.permute.xlu0 %307
  %309 = vrot.lane.b32.xlu0 %v304, 17
  %v310 = vpop.permute.xlu0 %309
  %v311 = vsel %vm64, %v308, %v310
  %v315 = vsel %vm64, 0.0, %v308
  %v316 = vsel %vm64, %v310, 0.0
  %v317 = vsel %vm73, 0.0, %v315
  %v318 = vsel %vm74, 0.0, %v311
  %321 = vrot.lane.b32.xlu0 %v315, 126
  %v322 = vpop.permute.xlu0 %321
  %323 = vrot.lane.b32.xlu0 %v311, 126
  %v324 = vpop.permute.xlu0 %323
  %325 = vrot.lane.b32.xlu0 %v316, 126
  %v326 = vpop.permute.xlu0 %325
  %v327 = vsel %vm89, %v322, %v324
  %v328 = vsel %vm89, %v324, %v326
  %v331 = vsel %vm79, 0.0, %v327
  %v332 = vsel %vm80, 0.0, %v328
  %333 = vrot.lane.b32.xlu0 %v315, 112
  %v334 = vpop.permute.xlu0 %333
  %335 = vrot.lane.b32.xlu0 %v311, 112
  %v336 = vpop.permute.xlu0 %335
  %337 = vrot.lane.b32.xlu0 %v316, 112
  %v338 = vpop.permute.xlu0 %337
  %v339 = vsel %vm102, %v334, %v336
  %v340 = vsel %vm102, %v336, %v338
  %v343 = vsel %vm73, 0.0, %v339
  %v344 = vsel %vm74, 0.0, %v340
  %345 = vrot.lane.b32.xlu0 %v315, 110
  %v346 = vpop.permute.xlu0 %345
  %347 = vrot.lane.b32.xlu0 %v311, 110
  %v348 = vpop.permute.xlu0 %347
  %349 = vrot.lane.b32.xlu0 %v316, 110
  %v350 = vpop.permute.xlu0 %349
  %v351 = vsel %vm115, %v346, %v348
  %v352 = vsel %vm115, %v348, %v350
  %v355 = vsel %vm79, 0.0, %v351
  %v356 = vsel %vm80, 0.0, %v352
  %357 = vrot.lane.b32.xlu0 %v315, 96
  %v358 = vpop.permute.xlu0 %357
  %359 = vrot.lane.b32.xlu0 %v311, 96
  %v360 = vpop.permute.xlu0 %359
  %361 = vrot.lane.b32.xlu0 %v316, 96
  %v362 = vpop.permute.xlu0 %361
  %v363 = vsel %vm128, %v358, %v360
  %v364 = vsel %vm128, %v360, %v362
  %v367 = vsel %vm73, 0.0, %v363
  %v368 = vsel %vm74, 0.0, %v364
  %369 = vrot.lane.b32.xlu0 %v315, 94
  %v370 = vpop.permute.xlu0 %369
  %371 = vrot.lane.b32.xlu0 %v311, 94
  %v372 = vpop.permute.xlu0 %371
  %373 = vrot.lane.b32.xlu0 %v316, 94
  %v374 = vpop.permute.xlu0 %373
  %v375 = vsel %vm141, %v370, %v372
  %v376 = vsel %vm141, %v372, %v374
  %v379 = vsel %vm79, 0.0, %v375
  %v380 = vsel %vm80, 0.0, %v376
  %381 = vrot.lane.b32.xlu0 %v315, 127
  %v382 = vpop.permute.xlu0 %381
  %383 = vrot.lane.b32.xlu0 %v311, 127
  %v384 = vpop.permute.xlu0 %383
  %385 = vrot.lane.b32.xlu0 %v316, 127
  %v386 = vpop.permute.xlu0 %385
  %v387 = vsel %vm157, %v382, %v384
  %v388 = vsel %vm157, %v384, %v386
  %391 = vrot.lane.b32.xlu0 %v315, 111
  %v392 = vpop.permute.xlu0 %391
  %393 = vrot.lane.b32.xlu0 %v311, 111
  %v394 = vpop.permute.xlu0 %393
  %395 = vrot.lane.b32.xlu0 %v316, 111
  %v396 = vpop.permute.xlu0 %395
  %v397 = vsel %vm174, %v392, %v394
  %v398 = vsel %vm174, %v394, %v396
  %401 = vrot.lane.b32.xlu0 %v315, 95
  %v402 = vpop.permute.xlu0 %401
  %403 = vrot.lane.b32.xlu0 %v311, 95
  %v404 = vpop.permute.xlu0 %403
  %405 = vrot.lane.b32.xlu0 %v316, 95
  %v406 = vpop.permute.xlu0 %405
  %v407 = vsel %vm191, %v402, %v404
  %v408 = vsel %vm191, %v404, %v406
  %v411 = vld [vmem:[%s4] sm:$0xff]
  %vm412 = vcmask 588800
  %v414 = vsel %vm412, %v411, 0
  %416 = vmatprep.subr.mxu0 %v318
  %417 = vmatpush1.msra.mxu0 %v317
  %418 = vmatprep.subr.mxu0 %v388
  %419 = vmatpush1.msra.mxu0 %v387
  %420 = vmatprep.subr.mxu0 %v332
  %421 = vmatpush1.msra.mxu0 %v331
  %422 = vmatprep.subr.mxu0 %v344
  %423 = vmatpush1.msra.mxu0 %v343
  %424 = vmatprep.subr.mxu0 %v398
  %425 = vmatpush1.msra.mxu0 %v397
  %426 = vmatprep.subr.mxu0 %v356
  %427 = vmatpush1.msra.mxu0 %v355
  %428 = vmatprep.subr.mxu0 %v368
  %429 = vmatpush1.msra.mxu0 %v367
  %430 = vmatprep.subr.mxu0 %v408
  %431 = vmatpush1.msra.mxu0 %v407
  %432 = vmatprep.subr.mxu0 %v380
  %433 = vmatpush1.msra.mxu0 %v379
  %434 = vmatprep.subr.mxu0 0.0
  %435 = vmatpush1.msra.mxu0 0.0
  %436 = vmatprep.subr.mxu0 0.0
  %437 = vmatpush1.msra.mxu0 0.0
  %438 = vmatprep.subr.mxu0 0.0
  %439 = vmatpush1.msra.mxu0 0.0
  %440 = vmatprep.subr.mxu0 0.0
  %441 = vmatpush1.msra.mxu0 0.0
  %442 = vmatprep.subr.mxu0 0.0
  %443 = vmatpush1.msra.mxu0 0.0
  %444 = vmatprep.subr.mxu0 0.0
  %445 = vmatpush1.msra.mxu0 0.0
  %446 = vmatprep.subr.mxu0 0.0
  %447 = vmatpush1.msra.mxu0 0.0
  %448 = vmatprep.subr.mxu0 0.0
  %449 = vmatpush1.msra.mxu0 0.0
  %450 = vmatprep.subr.mxu0 0.0
  %451 = vmatpush1.msra.mxu0 0.0
  %452 = vmatprep.subr.mxu0 0.0
  %453 = vmatpush1.msra.mxu0 0.0
  %454 = vmatprep.subr.mxu0 0.0
  %455 = vmatpush1.msra.mxu0 0.0
  %456 = vmatprep.subr.mxu0 0.0
  %457 = vmatpush1.msra.mxu0 0.0
  %458 = vmatprep.subr.mxu0 0.0
  %459 = vmatpush1.msra.mxu0 0.0
  %460 = vmatprep.subr.mxu0 0.0
  %461 = vmatpush1.msra.mxu0 0.0
  %462 = vmatprep.subr.mxu0 0.0
  %463 = vmatpush1.msra.mxu0 0.0
  %464 = vmatprep.subr.mxu0 0.0
  %465 = vmatpush1.msra.mxu0 0.0
  %466 = vmatprep.subr.mxu0 0.0
  %467 = vmatpush1.msra.mxu0 0.0
  %468 = vmatprep.subr.mxu0 0.0
  %469 = vmatpush1.msra.mxu0 0.0
  %470 = vmatprep.subr.mxu0 0.0
  %471 = vmatpush1.msra.mxu0 0.0
  %472 = vmatprep.subr.mxu0 0.0
  %473 = vmatpush1.msra.mxu0 0.0
  %474 = vmatprep.subr.mxu0 0.0
  %475 = vmatpush1.msra.mxu0 0.0
  %476 = vmatprep.subr.mxu0 0.0
  %477 = vmatpush1.msra.mxu0 0.0
  %478 = vmatprep.subr.mxu0 0.0
  %479 = vmatpush1.msra.mxu0 0.0
  %480 = vmatprep.mubr.f32.mxu0 0.0
  %481 = vmatmul.mubr.f32.gmra.mrb[0].mxu0 %v414
  %v482 = vpop.f32.mrb[0].mxu0
  %v483 = vadd.f32 0.0, %v482
  %v484 = vpop.f32.mrb[0].mxu0
  %v485 = vadd.f32 0.0, %v484
  %486 = vdwg.mxu0
  %v487 = vld [vmem:[%s5] sm:$0xff]
  %489 = vset.pattern.permute.xlu0 0
  %490 = vperm.xlu0 %489, %v487
  %v491 = vpop.permute.xlu0 %490
  %v493 = vmul.f32 %v483, %v491
  %v494 = vmul.f32 %v485, %v491
  %v495 = vld [vmem:[%s6] sm:$0xff]
  %497 = vset.pattern.permute.xlu0 0
  %498 = vperm.xlu0 %497, %v495
  %v499 = vpop.permute.xlu0 %498
  %v501 = vadd.f32 %v493, %v499
  %v502 = vadd.f32 %v494, %v499
  %v503 = vmax.f32 %v501, 0.0
  %v504 = vmax.f32 %v502, 0.0
  %505 = vst [vmem:[%s7] sm:$0xff] %v503
  %506 = vst [vmem:[%s7 + $0x8] sm:$0xff] %v504
  %s507 = scalar_lea.vmem %s0, 8
  %v508 = vld [vmem:[%s507] sm:$0xff]
  %v510 = vcombine.high %v508, %v508
  %511 = vrot.lane.b32.xlu0 %v508, 17
  %v512 = vpop.permute.xlu0 %511
  %513 = vrot.lane.b32.xlu0 %v510, 17
  %v514 = vpop.permute.xlu0 %513
  %v515 = vsel %vm64, %v512, %v514
  %v519 = vsel %vm64, 0.0, %v512
  %v520 = vsel %vm64, %v514, 0.0
  %v521 = vsel %vm73, 0.0, %v519
  %v522 = vsel %vm74, 0.0, %v515
  %525 = vrot.lane.b32.xlu0 %v519, 126
  %v526 = vpop.permute.xlu0 %525
  %527 = vrot.lane.b32.xlu0 %v515, 126
  %v528 = vpop.permute.xlu0 %527
  %529 = vrot.lane.b32.xlu0 %v520, 126
  %v530 = vpop.permute.xlu0 %529
  %v531 = vsel %vm89, %v526, %v528
  %v532 = vsel %vm89, %v528, %v530
  %v535 = vsel %vm79, 0.0, %v531
  %v536 = vsel %vm80, 0.0, %v532
  %537 = vrot.lane.b32.xlu0 %v519, 112
  %v538 = vpop.permute.xlu0 %537
  %539 = vrot.lane.b32.xlu0 %v515, 112
  %v540 = vpop.permute.xlu0 %539
  %541 = vrot.lane.b32.xlu0 %v520, 112
  %v542 = vpop.permute.xlu0 %541
  %v543 = vsel %vm102, %v538, %v540
  %v544 = vsel %vm102, %v540, %v542
  %v547 = vsel %vm73, 0.0, %v543
  %v548 = vsel %vm74, 0.0, %v544
  %549 = vrot.lane.b32.xlu0 %v519, 110
  %v550 = vpop.permute.xlu0 %549
  %551 = vrot.lane.b32.xlu0 %v515, 110
  %v552 = vpop.permute.xlu0 %551
  %553 = vrot.lane.b32.xlu0 %v520, 110
  %v554 = vpop.permute.xlu0 %553
  %v555 = vsel %vm115, %v550, %v552
  %v556 = vsel %vm115, %v552, %v554
  %v559 = vsel %vm79, 0.0, %v555
  %v560 = vsel %vm80, 0.0, %v556
  %561 = vrot.lane.b32.xlu0 %v519, 96
  %v562 = vpop.permute.xlu0 %561
  %563 = vrot.lane.b32.xlu0 %v515, 96
  %v564 = vpop.permute.xlu0 %563
  %565 = vrot.lane.b32.xlu0 %v520, 96
  %v566 = vpop.permute.xlu0 %565
  %v567 = vsel %vm128, %v562, %v564
  %v568 = vsel %vm128, %v564, %v566
  %v571 = vsel %vm73, 0.0, %v567
  %v572 = vsel %vm74, 0.0, %v568
  %573 = vrot.lane.b32.xlu0 %v519, 94
  %v574 = vpop.permute.xlu0 %573
  %575 = vrot.lane.b32.xlu0 %v515, 94
  %v576 = vpop.permute.xlu0 %575
  %577 = vrot.lane.b32.xlu0 %v520, 94
  %v578 = vpop.permute.xlu0 %577
  %v579 = vsel %vm141, %v574, %v576
  %v580 = vsel %vm141, %v576, %v578
  %v583 = vsel %vm79, 0.0, %v579
  %v584 = vsel %vm80, 0.0, %v580
  %v585 = vrot.slane %v519, 4
  %v586 = vrot.slane %v515, 4
  %v587 = vrot.slane %v520, 4
  %588 = vrot.lane.b32.xlu0 %v585, 127
  %v589 = vpop.permute.xlu0 %588
  %590 = vrot.lane.b32.xlu0 %v586, 127
  %v591 = vpop.permute.xlu0 %590
  %592 = vrot.lane.b32.xlu0 %v587, 127
  %v593 = vpop.permute.xlu0 %592
  %v594 = vsel %vm157, %v589, %v591
  %v595 = vsel %vm157, %v591, %v593
  %v600 = vrot.slane %v547, 4
  %v601 = vrot.slane %v548, 4
  %604 = vrot.lane.b32.xlu0 %v519, 111
  %v605 = vpop.permute.xlu0 %604
  %606 = vrot.lane.b32.xlu0 %v515, 111
  %v607 = vpop.permute.xlu0 %606
  %608 = vrot.lane.b32.xlu0 %v520, 111
  %v609 = vpop.permute.xlu0 %608
  %v610 = vsel %vm174, %v605, %v607
  %v611 = vsel %vm174, %v607, %v609
  %v616 = vrot.slane %v559, 4
  %v617 = vrot.slane %v560, 4
  %620 = vrot.lane.b32.xlu0 %v585, 95
  %v621 = vpop.permute.xlu0 %620
  %622 = vrot.lane.b32.xlu0 %v586, 95
  %v623 = vpop.permute.xlu0 %622
  %624 = vrot.lane.b32.xlu0 %v587, 95
  %v625 = vpop.permute.xlu0 %624
  %v626 = vsel %vm191, %v621, %v623
  %v627 = vsel %vm191, %v623, %v625
  %v630 = vsel %vm196, %v521, %v594
  %v631 = vsel %vm196, %v522, %v595
  %v632 = vsel %vm196, %v535, %v600
  %v633 = vsel %vm196, %v536, %v601
  %v634 = vsel %vm196, %v610, %v616
  %v635 = vsel %vm196, %v611, %v617
  %v636 = vsel %vm196, %v571, %v626
  %v637 = vsel %vm196, %v572, %v627
  %v638 = vld [vmem:[%s1] sm:$0xff]
  %v640 = vsel %vm206, %v638, 0
  %v643 = vsel %vm196, %v583, 0
  %v646 = vsel %vm196, %v584, 0
  %648 = vmatprep.subr.mxu0 %v631
  %649 = vmatpush1.msra.mxu0 %v630
  %650 = vmatprep.subr.mxu0 %v633
  %651 = vmatpush1.msra.mxu0 %v632
  %652 = vmatprep.subr.mxu0 %v635
  %653 = vmatpush1.msra.mxu0 %v634
  %654 = vmatprep.subr.mxu0 %v637
  %655 = vmatpush1.msra.mxu0 %v636
  %656 = vmatprep.subr.mxu0 %v646
  %657 = vmatpush1.msra.mxu0 %v643
  %658 = vmatprep.subr.mxu0 0.0
  %659 = vmatpush1.msra.mxu0 0.0
  %660 = vmatprep.subr.mxu0 0.0
  %661 = vmatpush1.msra.mxu0 0.0
  %662 = vmatprep.subr.mxu0 0.0
  %663 = vmatpush1.msra.mxu0 0.0
  %664 = vmatprep.subr.mxu0 0.0
  %665 = vmatpush1.msra.mxu0 0.0
  %666 = vmatprep.subr.mxu0 0.0
  %667 = vmatpush1.msra.mxu0 0.0
  %668 = vmatprep.subr.mxu0 0.0
  %669 = vmatpush1.msra.mxu0 0.0
  %670 = vmatprep.subr.mxu0 0.0
  %671 = vmatpush1.msra.mxu0 0.0
  %672 = vmatprep.subr.mxu0 0.0
  %673 = vmatpush1.msra.mxu0 0.0
  %674 = vmatprep.subr.mxu0 0.0
  %675 = vmatpush1.msra.mxu0 0.0
  %676 = vmatprep.subr.mxu0 0.0
  %677 = vmatpush1.msra.mxu0 0.0
  %678 = vmatprep.subr.mxu0 0.0
  %679 = vmatpush1.msra.mxu0 0.0
  %680 = vmatprep.subr.mxu0 0.0
  %681 = vmatpush1.msra.mxu0 0.0
  %682 = vmatprep.subr.mxu0 0.0
  %683 = vmatpush1.msra.mxu0 0.0
  %684 = vmatprep.subr.mxu0 0.0
  %685 = vmatpush1.msra.mxu0 0.0
  %686 = vmatprep.subr.mxu0 0.0
  %687 = vmatpush1.msra.mxu0 0.0
  %688 = vmatprep.subr.mxu0 0.0
  %689 = vmatpush1.msra.mxu0 0.0
  %690 = vmatprep.subr.mxu0 0.0
  %691 = vmatpush1.msra.mxu0 0.0
  %692 = vmatprep.subr.mxu0 0.0
  %693 = vmatpush1.msra.mxu0 0.0
  %694 = vmatprep.subr.mxu0 0.0
  %695 = vmatpush1.msra.mxu0 0.0
  %696 = vmatprep.subr.mxu0 0.0
  %697 = vmatpush1.msra.mxu0 0.0
  %698 = vmatprep.subr.mxu0 0.0
  %699 = vmatpush1.msra.mxu0 0.0
  %700 = vmatprep.subr.mxu0 0.0
  %701 = vmatpush1.msra.mxu0 0.0
  %702 = vmatprep.subr.mxu0 0.0
  %703 = vmatpush1.msra.mxu0 0.0
  %704 = vmatprep.subr.mxu0 0.0
  %705 = vmatpush1.msra.mxu0 0.0
  %706 = vmatprep.subr.mxu0 0.0
  %707 = vmatpush1.msra.mxu0 0.0
  %708 = vmatprep.subr.mxu0 0.0
  %709 = vmatpush1.msra.mxu0 0.0
  %710 = vmatprep.subr.mxu0 0.0
  %711 = vmatpush1.msra.mxu0 0.0
  %712 = vmatprep.mubr.f32.mxu0 0.0
  %713 = vmatmul.mubr.f32.gmra.mrb[0].mxu0 %v640
  %v714 = vpop.f32.mrb[0].mxu0
  %v715 = vadd.f32 0.0, %v714
  %v716 = vpop.f32.mrb[0].mxu0
  %v717 = vadd.f32 0.0, %v716
  %718 = vdwg.mxu0
  %v719 = vld [vmem:[%s2] sm:$0xff]
  %721 = vset.pattern.permute.xlu0 0
  %722 = vperm.xlu0 %721, %v719
  %v723 = vpop.permute.xlu0 %722
  %v725 = vmul.f32 %v715, %v723
  %v726 = vmul.f32 %v717, %v723
  %v727 = vld [vmem:[%s3] sm:$0xff]
  %729 = vset.pattern.permute.xlu0 0
  %730 = vperm.xlu0 %729, %v727
  %v731 = vpop.permute.xlu0 %730
  %v733 = vadd.f32 %v725, %v731
  %v734 = vadd.f32 %v726, %v731
  %v735 = vmax.f32 %v733, 0.0
  %v736 = vmax.f32 %v734, 0.0
  %739 = vrot.lane.b32.xlu0 %v735, 17
  %v740 = vpop.permute.xlu0 %739
  %741 = vrot.lane.b32.xlu0 %v736, 17
  %v742 = vpop.permute.xlu0 %741
  %v743 = vsel %vm64, %v740, %v742
  %v747 = vsel %vm64, 0.0, %v740
  %v748 = vsel %vm64, %v742, 0.0
  %v749 = vsel %vm73, 0.0, %v747
  %v750 = vsel %vm74, 0.0, %v743
  %753 = vrot.lane.b32.xlu0 %v747, 126
  %v754 = vpop.permute.xlu0 %753
  %755 = vrot.lane.b32.xlu0 %v743, 126
  %v756 = vpop.permute.xlu0 %755
  %757 = vrot.lane.b32.xlu0 %v748, 126
  %v758 = vpop.permute.xlu0 %757
  %v759 = vsel %vm89, %v754, %v756
  %v760 = vsel %vm89, %v756, %v758
  %v763 = vsel %vm79, 0.0, %v759
  %v764 = vsel %vm80, 0.0, %v760
  %765 = vrot.lane.b32.xlu0 %v747, 112
  %v766 = vpop.permute.xlu0 %765
  %767 = vrot.lane.b32.xlu0 %v743, 112
  %v768 = vpop.permute.xlu0 %767
  %769 = vrot.lane.b32.xlu0 %v748, 112
  %v770 = vpop.permute.xlu0 %769
  %v771 = vsel %vm102, %v766, %v768
  %v772 = vsel %vm102, %v768, %v770
  %v775 = vsel %vm73, 0.0, %v771
  %v776 = vsel %vm74, 0.0, %v772
  %777 = vrot.lane.b32.xlu0 %v747, 110
  %v778 = vpop.permute.xlu0 %777
  %779 = vrot.lane.b32.xlu0 %v743, 110
  %v780 = vpop.permute.xlu0 %779
  %781 = vrot.lane.b32.xlu0 %v748, 110
  %v782 = vpop.permute.xlu0 %781
  %v783 = vsel %vm115, %v778, %v780
  %v784 = vsel %vm115, %v780, %v782
  %v787 = vsel %vm79, 0.0, %v783
  %v788 = vsel %vm80, 0.0, %v784
  %789 = vrot.lane.b32.xlu0 %v747, 96
  %v790 = vpop.permute.xlu0 %789
  %791 = vrot.lane.b32.xlu0 %v743, 96
  %v792 = vpop.permute.xlu0 %791
  %793 = vrot.lane.b32.xlu0 %v748, 96
  %v794 = vpop.permute.xlu0 %793
  %v795 = vsel %vm128, %v790, %v792
  %v796 = vsel %vm128, %v792, %v794
  %v799 = vsel %vm73, 0.0, %v795
  %v800 = vsel %vm74, 0.0, %v796
  %801 = vrot.lane.b32.xlu0 %v747, 94
  %v802 = vpop.permute.xlu0 %801
  %803 = vrot.lane.b32.xlu0 %v743, 94
  %v804 = vpop.permute.xlu0 %803
  %805 = vrot.lane.b32.xlu0 %v748, 94
  %v806 = vpop.permute.xlu0 %805
  %v807 = vsel %vm141, %v802, %v804
  %v808 = vsel %vm141, %v804, %v806
  %v811 = vsel %vm79, 0.0, %v807
  %v812 = vsel %vm80, 0.0, %v808
  %813 = vrot.lane.b32.xlu0 %v747, 127
  %v814 = vpop.permute.xlu0 %813
  %815 = vrot.lane.b32.xlu0 %v743, 127
  %v816 = vpop.permute.xlu0 %815
  %817 = vrot.lane.b32.xlu0 %v748, 127
  %v818 = vpop.permute.xlu0 %817
  %v819 = vsel %vm157, %v814, %v816
  %v820 = vsel %vm157, %v816, %v818
  %823 = vrot.lane.b32.xlu0 %v747, 111
  %v824 = vpop.permute.xlu0 %823
  %825 = vrot.lane.b32.xlu0 %v743, 111
  %v826 = vpop.permute.xlu0 %825
  %827 = vrot.lane.b32.xlu0 %v748, 111
  %v828 = vpop.permute.xlu0 %827
  %v829 = vsel %vm174, %v824, %v826
  %v830 = vsel %vm174, %v826, %v828
  %833 = vrot.lane.b32.xlu0 %v747, 95
  %v834 = vpop.permute.xlu0 %833
  %835 = vrot.lane.b32.xlu0 %v743, 95
  %v836 = vpop.permute.xlu0 %835
  %837 = vrot.lane.b32.xlu0 %v748, 95
  %v838 = vpop.permute.xlu0 %837
  %v839 = vsel %vm191, %v834, %v836
  %v840 = vsel %vm191, %v836, %v838
  %v843 = vld [vmem:[%s4] sm:$0xff]
  %v845 = vsel %vm412, %v843, 0
  %847 = vmatprep.subr.mxu0 %v750
  %848 = vmatpush1.msra.mxu0 %v749
  %849 = vmatprep.subr.mxu0 %v820
  %850 = vmatpush1.msra.mxu0 %v819
  %851 = vmatprep.subr.mxu0 %v764
  %852 = vmatpush1.msra.mxu0 %v763
  %853 = vmatprep.subr.mxu0 %v776
  %854 = vmatpush1.msra.mxu0 %v775
  %855 = vmatprep.subr.mxu0 %v830
  %856 = vmatpush1.msra.mxu0 %v829
  %857 = vmatprep.subr.mxu0 %v788
  %858 = vmatpush1.msra.mxu0 %v787
  %859 = vmatprep.subr.mxu0 %v800
  %860 = vmatpush1.msra.mxu0 %v799
  %861 = vmatprep.subr.mxu0 %v840
  %862 = vmatpush1.msra.mxu0 %v839
  %863 = vmatprep.subr.mxu0 %v812
  %864 = vmatpush1.msra.mxu0 %v811
  %865 = vmatprep.subr.mxu0 0.0
  %866 = vmatpush1.msra.mxu0 0.0
  %867 = vmatprep.subr.mxu0 0.0
  %868 = vmatpush1.msra.mxu0 0.0
  %869 = vmatprep.subr.mxu0 0.0
  %870 = vmatpush1.msra.mxu0 0.0
  %871 = vmatprep.subr.mxu0 0.0
  %872 = vmatpush1.msra.mxu0 0.0
  %873 = vmatprep.subr.mxu0 0.0
  %874 = vmatpush1.msra.mxu0 0.0
  %875 = vmatprep.subr.mxu0 0.0
  %876 = vmatpush1.msra.mxu0 0.0
  %877 = vmatprep.subr.mxu0 0.0
  %878 = vmatpush1.msra.mxu0 0.0
  %879 = vmatprep.subr.mxu0 0.0
  %880 = vmatpush1.msra.mxu0 0.0
  %881 = vmatprep.subr.mxu0 0.0
  %882 = vmatpush1.msra.mxu0 0.0
  %883 = vmatprep.subr.mxu0 0.0
  %884 = vmatpush1.msra.mxu0 0.0
  %885 = vmatprep.subr.mxu0 0.0
  %886 = vmatpush1.msra.mxu0 0.0
  %887 = vmatprep.subr.mxu0 0.0
  %888 = vmatpush1.msra.mxu0 0.0
  %889 = vmatprep.subr.mxu0 0.0
  %890 = vmatpush1.msra.mxu0 0.0
  %891 = vmatprep.subr.mxu0 0.0
  %892 = vmatpush1.msra.mxu0 0.0
  %893 = vmatprep.subr.mxu0 0.0
  %894 = vmatpush1.msra.mxu0 0.0
  %895 = vmatprep.subr.mxu0 0.0
  %896 = vmatpush1.msra.mxu0 0.0
  %897 = vmatprep.subr.mxu0 0.0
  %898 = vmatpush1.msra.mxu0 0.0
  %899 = vmatprep.subr.mxu0 0.0
  %900 = vmatpush1.msra.mxu0 0.0
  %901 = vmatprep.subr.mxu0 0.0
  %902 = vmatpush1.msra.mxu0 0.0
  %903 = vmatprep.subr.mxu0 0.0
  %904 = vmatpush1.msra.mxu0 0.0
  %905 = vmatprep.subr.mxu0 0.0
  %906 = vmatpush1.msra.mxu0 0.0
  %907 = vmatprep.subr.mxu0 0.0
  %908 = vmatpush1.msra.mxu0 0.0
  %909 = vmatprep.subr.mxu0 0.0
  %910 = vmatpush1.msra.mxu0 0.0
  %911 = vmatprep.mubr.f32.mxu0 0.0
  %912 = vmatmul.mubr.f32.gmra.mrb[0].mxu0 %v845
  %v913 = vpop.f32.mrb[0].mxu0
  %v914 = vadd.f32 0.0, %v913
  %v915 = vpop.f32.mrb[0].mxu0
  %v916 = vadd.f32 0.0, %v915
  %917 = vdwg.mxu0
  %v918 = vld [vmem:[%s5] sm:$0xff]
  %920 = vset.pattern.permute.xlu0 0
  %921 = vperm.xlu0 %920, %v918
  %v922 = vpop.permute.xlu0 %921
  %v924 = vmul.f32 %v914, %v922
  %v925 = vmul.f32 %v916, %v922
  %v926 = vld [vmem:[%s6] sm:$0xff]
  %928 = vset.pattern.permute.xlu0 0
  %929 = vperm.xlu0 %928, %v926
  %v930 = vpop.permute.xlu0 %929
  %v932 = vadd.f32 %v924, %v930
  %v933 = vadd.f32 %v925, %v930
  %v934 = vmax.f32 %v932, 0.0
  %v935 = vmax.f32 %v933, 0.0
  %s936 = scalar_lea.vmem %s7, 16
  %937 = vst [vmem:[%s936] sm:$0xff] %v934
  %938 = vst [vmem:[%s936 + $0x8] sm:$0xff] %v935
  // Predicated region
  $region30: #{jet_dwn_forward.1} parent=0 // pred_check
    _
  $region31: #{jet_dwn_forward.1} parent=0 // pred_check_branch
    %940 = sbr.rel (0) target = $region33
  $region32: #{jet_dwn_forward.1} parent=0 // pred_region
    _
  $region33: #{jet_dwn_forward.1} parent=0 // pred_fallthru
    _
  // Predicated region
  $region34: #{jet_dwn_forward.1} parent=0 // pred_check
    _
  $region35: #{jet_dwn_forward.1} parent=0 // pred_check_branch
    %942 = sbr.rel (0) target = $region37
  $region36: #{jet_dwn_forward.1} parent=0 // pred_region
    _
  $region37: #{jet_dwn_forward.1} parent=0 // pred_fallthru
    _

</llo_original>
